<compile_context>
chip_gen: v7x
topology: tpu7x:2x2x1
jax: 0.10.0
libtpu: 0.0.40
codegen_flags: <defaults>
</compile_context>

<pallas_src>
import jax
import jax.numpy as jnp
from jax.experimental import pallas as pl
from jax.experimental.pallas import tpu as pltpu

_BN_EPS = 1e-5
_LANE = 128


def _round_up(n, m):
    return (n + m - 1) // m * m


def _vmem_limit_bytes():
    """Scoped-VMEM budget: physical capacity minus ~8 MiB headroom.

    v5e/v6e have 128 MiB VMEM per TensorCore, v7x only 64 MiB; leave slack for
    compiler-internal scratch/semaphores.  Falls back to a safe 64 MiB.
    """
    try:
        cap = getattr(pltpu.get_tpu_info(), "vmem_capacity_bytes", None)
    except Exception:
        cap = None
    if cap is None:
        return 64 * 1024 * 1024
    return int(max(32 * 1024 * 1024, int(cap) - 8 * 1024 * 1024))


def tucker_kernel(e_ref, r_ref, w_ref, bn0_ref, bn1_ref, out_ref, acc_ref):
    k = pl.program_id(1)

    @pl.when(k == 0)
    def _():
        acc_ref[...] = jnp.zeros_like(acc_ref)

    # --- eval-mode BN0 folded to a single affine; input dropout = identity ---
    x = e_ref[...].astype(jnp.float32) * bn0_ref[0:1, :] + bn0_ref[1:2, :]  # (tb, dim_p)
    r = r_ref[...].astype(jnp.float32)                                      # (tb, rk)
    rk = r.shape[1]

    # Z[b, j*dim_p + i] = r[b, k0 + j] * x[b, i] for the current rk-chunk.
    # Each (tb, dim_p) piece is 128-lane aligned, so the lane concatenation is
    # layout-trivial (pure VPU broadcasts, no relayout / in-kernel reshape).
    z = jnp.concatenate([r[:, j:j + 1] * x for j in range(rk)], axis=-1)    # (tb, rk*dim_p)

    # One MXU contraction per (batch tile, k-chunk); bf16 operands, f32 acc:
    #   acc[b, jj] += sum_{j,i} r[b, k0+j] * x[b, i] * W[k0+j, i, jj]
    acc_ref[...] += jnp.dot(z.astype(w_ref.dtype), w_ref[...],
                            preferred_element_type=jnp.float32)

    @pl.when(k == pl.num_programs(1) - 1)
    def _():
        # --- eval-mode BN1 folded affine; hidden/out dropout = identity ---
        out_ref[...] = (acc_ref[...] * bn1_ref[0:1, :]
                        + bn1_ref[1:2, :]).astype(out_ref.dtype)


def prepare_tucker_weights(W, bn0_params, bn1_params, *, rk=8,
                           matmul_dtype=jnp.bfloat16):
    """One-time weight prep (call at weight-load time, not per forward).

    Pads W to (r_dim_p, dim_p, dim_p), flattens to 2D, casts to the matmul
    dtype, and folds the eval-mode BN params into (scale, shift) rows.
    Padded slots are arranged to contribute exactly zero.
    """
    r_dim, dim, dim2 = W.shape
    assert dim == dim2, "core tensor must be (r_dim, dim, dim)"
    assert bn0_params.shape == (4, dim) and bn1_params.shape == (4, dim)

    dim_p = _round_up(dim, _LANE)
    r_dim_p = _round_up(r_dim, rk)

    w_p = jnp.zeros((r_dim_p, dim_p, dim_p), matmul_dtype)
    w_p = w_p.at[:r_dim, :dim, :dim].set(W.astype(matmul_dtype))
    w_flat = w_p.reshape(r_dim_p * dim_p, dim_p)        # row = k*dim_p + i

    def fold_bn(p):
        gamma, beta, mean, var = p[0], p[1], p[2], p[3]
        scale = gamma * jax.lax.rsqrt(var + _BN_EPS)
        shift = beta - mean * scale
        q = jnp.zeros((2, dim_p), jnp.float32)           # padded lanes: 0*x+0 = 0
        q = q.at[0, :dim].set(scale.astype(jnp.float32))
        q = q.at[1, :dim].set(shift.astype(jnp.float32))
        return q

    return dict(w_flat=w_flat, bn0=fold_bn(bn0_params), bn1=fold_bn(bn1_params),
                dim=dim, r_dim=r_dim, dim_p=dim_p, r_dim_p=r_dim_p, rk=rk)


def tucker_forward(e_embed, r_embed, prepared, *, tb=256):
    B, dim = e_embed.shape
    r_dim = r_embed.shape[1]
    assert dim == prepared["dim"] and r_dim == prepared["r_dim"]

    dim_p = prepared["dim_p"]
    r_dim_p = prepared["r_dim_p"]
    rk = prepared["rk"]
    num_k = r_dim_p // rk
    w_flat, bn0, bn1 = prepared["w_flat"], prepared["bn0"], prepared["bn1"]

    # Batch tile: 256 fills the 256-wide MXUs on v6e/v7x, but clamp to the
    # (8-aligned) batch so small batches aren't padded 8-16x.
    # TODO(synk): on v7x (2 TCs) a single batch tile leaves one core idle; with
    # B <= tb there is simply not enough batch work to split.
    tb = min(tb, _round_up(B, 8))
    B_pad = _round_up(B, tb)

    # Activations padded per call (cheap: B x dim / B x r_dim).  Zero pads +
    # zero BN scale/shift in padded lanes => padded outputs are exactly zero.
    e_p = jnp.zeros((B_pad, dim_p), jnp.float32).at[:B, :dim].set(
        e_embed.astype(jnp.float32))
    r_p = jnp.zeros((B_pad, r_dim_p), jnp.float32).at[:B, :r_dim].set(
        r_embed.astype(jnp.float32))
    # r chunked along a leading axis so every block's last dim equals the full
    # array dim (layout-legal without 128-lane padding of the tiny rk chunk).
    r_3d = r_p.reshape(B_pad, num_k, rk).transpose(1, 0, 2)   # (num_k, B_pad, rk)

    out = pl.pallas_call(
        tucker_kernel,
        out_shape=jax.ShapeDtypeStruct((B_pad, dim_p), jnp.float32),
        grid_spec=pltpu.PrefetchScalarGridSpec(
            num_scalar_prefetch=0,
            grid=(B_pad // tb, num_k),
            in_specs=[
                pl.BlockSpec((tb, dim_p), lambda i, k: (i, 0)),          # e (resident over k)
                pl.BlockSpec((None, tb, rk), lambda i, k: (k, i, 0)),    # r chunk
                pl.BlockSpec((rk * dim_p, dim_p), lambda i, k: (k, 0)),  # W slab (streamed)
                pl.BlockSpec((2, dim_p), lambda i, k: (0, 0)),           # bn0 scale/shift
                pl.BlockSpec((2, dim_p), lambda i, k: (0, 0)),           # bn1 scale/shift
            ],
            out_specs=pl.BlockSpec((tb, dim_p), lambda i, k: (i, 0)),
            scratch_shapes=[pltpu.VMEM((tb, dim_p), jnp.float32)],       # f32 accumulator
        ),
        compiler_params=pltpu.CompilerParams(
            dimension_semantics=("parallel", "arbitrary"),
            vmem_limit_bytes=_vmem_limit_bytes(),
        ),
    )(e_p, r_3d, w_flat, bn0, bn1)

    return out[:B, :dim]


def tucker_reference(e_embed, r_embed, W, bn0_params, bn1_params):
    """Pure-JAX f32 reference mirroring the PyTorch forward (eval mode)."""
    def bn(x, p):
        return (x - p[2]) * jax.lax.rsqrt(p[3] + _BN_EPS) * p[0] + p[1]

    B, dim = e_embed.shape
    r_dim = r_embed.shape[1]
    x = bn(e_embed, bn0_params)                       # (B, dim)
    x = x.reshape(B, 1, dim)
    r = r_embed @ W.reshape(r_dim, dim * dim)         # (B, dim*dim)
    r = r.reshape(B, dim, dim)
    y = jnp.einsum('bli,bij->blj', x, r).reshape(B, dim)
    return bn(y, bn1_params)


if __name__ == "__main__":
    # TODO(synk): dropout (p=0.3) and training-mode BatchNorm batch statistics
    # are stochastic / stateful; this kernel implements the deterministic
    # eval-mode forward (dropout = identity, BN uses running stats).
    B, dim, r_dim = 16, 32, 16

    key = jax.random.PRNGKey(0)
    (k_e, k_r, k_w, k_g0, k_b0, k_m0, k_v0,
     k_g1, k_b1, k_m1, k_v1) = jax.random.split(key, 11)

    e_embed = jax.random.normal(k_e, (B, dim), jnp.float32)
    r_embed = jax.random.normal(k_r, (B, r_dim), jnp.float32)

    # xavier_uniform_ over W of shape (r_dim, dim, dim).
    bound = (6.0 / (dim * dim + r_dim * dim)) ** 0.5
    W = jax.random.uniform(k_w, (r_dim, dim, dim), jnp.float32, -bound, bound)

    def bn_params(kg, kb, km, kv):
        gamma = jax.random.uniform(kg, (dim,), jnp.float32, 0.5, 1.5)
        beta = jax.random.normal(kb, (dim,), jnp.float32) * 0.1
        mean = jax.random.normal(km, (dim,), jnp.float32) * 0.1
        var = jax.random.uniform(kv, (dim,), jnp.float32, 0.5, 1.5)
        return jnp.stack([gamma, beta, mean, var], axis=0)      # (4, dim)

    bn0_params = bn_params(k_g0, k_b0, k_m0, k_v0)
    bn1_params = bn_params(k_g1, k_b1, k_m1, k_v1)

    # Weight prep hoisted out of the per-call path (done once, "at load time").
    prepared = prepare_tucker_weights(W, bn0_params, bn1_params, rk=8)

    out = tucker_forward(e_embed, r_embed, prepared)
    out = jax.block_until_ready(out)

    ref = tucker_reference(e_embed, r_embed, W, bn0_params, bn1_params)
    assert out.shape == (B, dim)
    # bf16 matmul operands (f32 accumulation) => looser tolerance vs f32 ref.
    assert jnp.allclose(out, ref, atol=3e-2, rtol=3e-2), "mismatch vs reference"

    print("KERNEL_OK")
</pallas_src>

<mosaic_0001>
module attributes {stable_mosaic.version = 11 : i64} {
  func.func @tucker_kernel(%arg0: i32, %arg1: i32, %arg2: memref<16x128xf32, #tpu.memory_space<vmem>>, %arg3: memref<1x16x8xf32, #tpu.memory_space<vmem>>, %arg4: memref<1024x128xbf16, #tpu.memory_space<vmem>>, %arg5: memref<2x128xf32, #tpu.memory_space<vmem>>, %arg6: memref<2x128xf32, #tpu.memory_space<vmem>>, %arg7: memref<16x128xf32, #tpu.memory_space<vmem>>, %arg8: memref<16x128xf32, #tpu.memory_space<vmem>>) attributes {dimension_semantics = [#tpu.dimension_semantics<parallel>, #tpu.dimension_semantics<arbitrary>], iteration_bounds = array<i64: 1, 2>, scalar_prefetch = 0 : i64, scratch_operands = 1 : i64, tpu.core_type = #tpu.core_type<tc>, window_params = [{transform_indices = @transform_0, window_bounds = array<i64: 16, 128>}, {transform_indices = @transform_1, window_bounds = array<i64: 1, 16, 8>}, {transform_indices = @transform_2, window_bounds = array<i64: 1024, 128>}, {pipeline_mode = #tpu.pipeline_mode<synchronous>, transform_indices = @transform_3, window_bounds = array<i64: 2, 128>}, {pipeline_mode = #tpu.pipeline_mode<synchronous>, transform_indices = @transform_4, window_bounds = array<i64: 2, 128>}, {transform_indices = @transform_5, window_bounds = array<i64: 16, 128>}]} {
    %c0_i32 = arith.constant 0 : i32
    %0 = arith.cmpi eq, %arg1, %c0_i32 : i32
    %1 = arith.extui %0 : i1 to i32
    %c0_i32_0 = arith.constant 0 : i32
    %2 = arith.cmpi ne, %1, %c0_i32_0 : i32
    scf.if %2 {
      %cst_15 = arith.constant 0.000000e+00 : f32
      %46 = vector.broadcast %cst_15 : f32 to vector<16x128xf32>
      %c0_16 = arith.constant 0 : index
      %c0_17 = arith.constant 0 : index
      %47 = vector.load %arg8[%c0_16, %c0_17] : memref<16x128xf32, #tpu.memory_space<vmem>>, vector<16x128xf32>
      tpu.vector_store %arg8[%c0_16, %c0_17], %46 {strides = array<i32>} : memref<16x128xf32, #tpu.memory_space<vmem>>, vector<16x128xf32>,
    } else {
    }
    %c0 = arith.constant 0 : index
    %c0_1 = arith.constant 0 : index
    %3 = vector.load %arg2[%c0, %c0_1] : memref<16x128xf32, #tpu.memory_space<vmem>>, vector<16x128xf32>
    %c0_2 = arith.constant 0 : index
    %c0_3 = arith.constant 0 : index
    %4 = vector.load %arg5[%c0_2, %c0_3] : memref<2x128xf32, #tpu.memory_space<vmem>>, vector<1x128xf32>
    %5 = vector.broadcast %4 : vector<1x128xf32> to vector<16x128xf32>
    %6 = arith.mulf %3, %5 : vector<16x128xf32>
    %c1 = arith.constant 1 : index
    %c0_4 = arith.constant 0 : index
    %7 = vector.load %arg5[%c1, %c0_4] : memref<2x128xf32, #tpu.memory_space<vmem>>, vector<1x128xf32>
    %8 = vector.broadcast %7 : vector<1x128xf32> to vector<16x128xf32>
    %9 = arith.addf %6, %8 : vector<16x128xf32>
    %c0_5 = arith.constant 0 : index
    %c0_6 = arith.constant 0 : index
    %c0_7 = arith.constant 0 : index
    %10 = vector.load %arg3[%c0_5, %c0_6, %c0_7] : memref<1x16x8xf32, #tpu.memory_space<vmem>>, vector<1x16x8xf32>
    %11 = vector.shape_cast %10 : vector<1x16x8xf32> to vector<16x8xf32>
    %12 = vector.extract_strided_slice %11 {offsets = [0, 0], sizes = [16, 1], strides = [1, 1]} : vector<16x8xf32> to vector<16x1xf32>
    %13 = vector.broadcast %12 : vector<16x1xf32> to vector<16x128xf32>
    %14 = arith.mulf %13, %9 : vector<16x128xf32>
    %15 = vector.extract_strided_slice %11 {offsets = [0, 1], sizes = [16, 1], strides = [1, 1]} : vector<16x8xf32> to vector<16x1xf32>
    %16 = vector.broadcast %15 : vector<16x1xf32> to vector<16x128xf32>
    %17 = arith.mulf %16, %9 : vector<16x128xf32>
    %18 = vector.extract_strided_slice %11 {offsets = [0, 2], sizes = [16, 1], strides = [1, 1]} : vector<16x8xf32> to vector<16x1xf32>
    %19 = vector.broadcast %18 : vector<16x1xf32> to vector<16x128xf32>
    %20 = arith.mulf %19, %9 : vector<16x128xf32>
    %21 = vector.extract_strided_slice %11 {offsets = [0, 3], sizes = [16, 1], strides = [1, 1]} : vector<16x8xf32> to vector<16x1xf32>
    %22 = vector.broadcast %21 : vector<16x1xf32> to vector<16x128xf32>
    %23 = arith.mulf %22, %9 : vector<16x128xf32>
    %24 = vector.extract_strided_slice %11 {offsets = [0, 4], sizes = [16, 1], strides = [1, 1]} : vector<16x8xf32> to vector<16x1xf32>
    %25 = vector.broadcast %24 : vector<16x1xf32> to vector<16x128xf32>
    %26 = arith.mulf %25, %9 : vector<16x128xf32>
    %27 = vector.extract_strided_slice %11 {offsets = [0, 5], sizes = [16, 1], strides = [1, 1]} : vector<16x8xf32> to vector<16x1xf32>
    %28 = vector.broadcast %27 : vector<16x1xf32> to vector<16x128xf32>
    %29 = arith.mulf %28, %9 : vector<16x128xf32>
    %30 = vector.extract_strided_slice %11 {offsets = [0, 6], sizes = [16, 1], strides = [1, 1]} : vector<16x8xf32> to vector<16x1xf32>
    %31 = vector.broadcast %30 : vector<16x1xf32> to vector<16x128xf32>
    %32 = arith.mulf %31, %9 : vector<16x128xf32>
    %33 = vector.extract_strided_slice %11 {offsets = [0, 7], sizes = [16, 1], strides = [1, 1]} : vector<16x8xf32> to vector<16x1xf32>
    %34 = vector.broadcast %33 : vector<16x1xf32> to vector<16x128xf32>
    %35 = arith.mulf %34, %9 : vector<16x128xf32>
    %36 = tpu.concatenate %14, %17, %20, %23, %26, %29, %32, %35 in 1 : vector<16x128xf32>, vector<16x128xf32>, vector<16x128xf32>, vector<16x128xf32>, vector<16x128xf32>, vector<16x128xf32>, vector<16x128xf32>, vector<16x128xf32> -> vector<16x1024xf32>
    %c0_8 = arith.constant 0 : index
    %c0_9 = arith.constant 0 : index
    %37 = vector.load %arg8[%c0_8, %c0_9] : memref<16x128xf32, #tpu.memory_space<vmem>>, vector<16x128xf32>
    %38 = arith.truncf %36 : vector<16x1024xf32> to vector<16x1024xbf16>
    %c0_10 = arith.constant 0 : index
    %c0_11 = arith.constant 0 : index
    %39 = vector.load %arg4[%c0_10, %c0_11] : memref<1024x128xbf16, #tpu.memory_space<vmem>>, vector<1024x128xbf16>
    %cst = arith.constant dense<0.000000e+00> : vector<16x128xf32>
    %40 = tpu.matmul %38, %39, %cst {dimension_numbers = #tpu.dot_dimension_numbers<[1], [0], [0], [1], [0, 0, 1, 1], [], []>} : vector<16x1024xbf16>, vector<1024x128xbf16>, vector<16x128xf32> -> vector<16x128xf32>
    %41 = arith.addf %37, %40 : vector<16x128xf32>
    %c0_12 = arith.constant 0 : index
    %c0_13 = arith.constant 0 : index
    %42 = vector.load %arg8[%c0_12, %c0_13] : memref<16x128xf32, #tpu.memory_space<vmem>>, vector<16x128xf32>
    tpu.vector_store %arg8[%c0_12, %c0_13], %41 {strides = array<i32>} : memref<16x128xf32, #tpu.memory_space<vmem>>, vector<16x128xf32>,
    %c1_i32 = arith.constant 1 : i32
    %43 = arith.cmpi eq, %arg1, %c1_i32 : i32
    %44 = arith.extui %43 : i1 to i32
    %c0_i32_14 = arith.constant 0 : i32
    %45 = arith.cmpi ne, %44, %c0_i32_14 : i32
    scf.if %45 {
      %c0_15 = arith.constant 0 : index
      %c0_16 = arith.constant 0 : index
      %46 = vector.load %arg8[%c0_15, %c0_16] : memref<16x128xf32, #tpu.memory_space<vmem>>, vector<16x128xf32>
      %c0_17 = arith.constant 0 : index
      %c0_18 = arith.constant 0 : index
      %47 = vector.load %arg6[%c0_17, %c0_18] : memref<2x128xf32, #tpu.memory_space<vmem>>, vector<1x128xf32>
      %48 = vector.broadcast %47 : vector<1x128xf32> to vector<16x128xf32>
      %49 = arith.mulf %46, %48 : vector<16x128xf32>
      %c1_19 = arith.constant 1 : index
      %c0_20 = arith.constant 0 : index
      %50 = vector.load %arg6[%c1_19, %c0_20] : memref<2x128xf32, #tpu.memory_space<vmem>>, vector<1x128xf32>
      %51 = vector.broadcast %50 : vector<1x128xf32> to vector<16x128xf32>
      %52 = arith.addf %49, %51 : vector<16x128xf32>
      %c0_21 = arith.constant 0 : index
      %c0_22 = arith.constant 0 : index
      %53 = vector.load %arg7[%c0_21, %c0_22] : memref<16x128xf32, #tpu.memory_space<vmem>>, vector<16x128xf32>
      tpu.vector_store %arg7[%c0_21, %c0_22], %52 {strides = array<i32>} : memref<16x128xf32, #tpu.memory_space<vmem>>, vector<16x128xf32>,
    } else {
    }
    return
  }
  func.func @transform_0(%arg0: i32, %arg1: i32) -> (i32, i32) {
    %c0_i32 = arith.constant 0 : i32
    %c0_i32_0 = arith.constant 0 : i32
    return %arg0, %c0_i32 : i32, i32
  }
  func.func @transform_1(%arg0: i32, %arg1: i32) -> (i32, i32, i32) {
    %c0_i32 = arith.constant 0 : i32
    %c0_i32_0 = arith.constant 0 : i32
    return %arg1, %arg0, %c0_i32 : i32, i32, i32
  }
  func.func @transform_2(%arg0: i32, %arg1: i32) -> (i32, i32) {
    %c0_i32 = arith.constant 0 : i32
    %c0_i32_0 = arith.constant 0 : i32
    return %arg1, %c0_i32 : i32, i32
  }
  func.func @transform_3(%arg0: i32, %arg1: i32) -> (i32, i32) {
    %c0_i32 = arith.constant 0 : i32
    %c0_i32_0 = arith.constant 0 : i32
    %c0_i32_1 = arith.constant 0 : i32
    return %c0_i32, %c0_i32_0 : i32, i32
  }
  func.func @transform_4(%arg0: i32, %arg1: i32) -> (i32, i32) {
    %c0_i32 = arith.constant 0 : i32
    %c0_i32_0 = arith.constant 0 : i32
    %c0_i32_1 = arith.constant 0 : i32
    return %c0_i32, %c0_i32_0 : i32, i32
  }
  func.func @transform_5(%arg0: i32, %arg1: i32) -> (i32, i32) {
    %c0_i32 = arith.constant 0 : i32
    %c0_i32_0 = arith.constant 0 : i32
    return %arg0, %c0_i32 : i32, i32
  }
}

</mosaic_0001>

<llo_original>
// kernel: tpu_custom_call.1
$region0: #{tpu_custom_call.1}
  #allocation0 [shape = 'u32[]', space=smem, size = 0x4, offset = 0x4, fixed_abs, tag = 'smem constant byte address 0x4 - core index']
  #allocation1 [shape = 'u32[144,128]{1,0:T(1,128)}', space=vmem, size = 0x12000, scoped, tag = 'internal scratch']
  #allocation2 [shape = 'f32[16,128]{1,0:T(8,128)}', space=vmem, size = 0x2000, scoped, tag = 'scratch operand']
  %s0 = inlined_call_operand.hbm [shape: f32[16,128], index: 0, kind: input, shape index: {}]
  %s1 = inlined_call_operand.hbm [shape: f32[2,16,8], index: 1, kind: input, shape index: {}]
  %s2 = inlined_call_operand.hbm [shape: bf16[2048,128], index: 2, kind: input, shape index: {}]
  %s3 = inlined_call_operand.hbm [shape: f32[2,128], index: 3, kind: input, shape index: {}]
  %s4 = inlined_call_operand.hbm [shape: f32[2,128], index: 4, kind: input, shape index: {}]
  %s5 = inlined_call_operand.hbm [shape: f32[16,128], index: 5, kind: output, shape index: {}]
  %s6 = sld [smem:[#allocation0]]
  $region81: #{tpu_custom_call.1} parent=0
    _
  %s8 = ssub.s32 1, %s6
  %s9 = scalar_select 0, %s8, %s6
  $region1: #{tpu_custom_call.1} parent=0
    #allocation3 [shape = 'u8[8192]{0}', space=vmem, size = 0x2000, scoped, tag = 'input window, operand 0, single buffered']
    #allocation4 [shape = 's32[2]{0}', space=sflag, size = 0x8, scoped, tag = 'scoped memory for tpu_custom_call.1']
    #allocation5 [shape = 's32[2]{0}', space=sflag, size = 0x8, scoped, tag = 'scoped memory for tpu_custom_call.1']
    #allocation6 [shape = 'u8[16384]{0}', space=vmem, size = 0x4000, scoped, tag = 'input window, operand 1']
    #allocation7 [shape = 's32[2]{0}', space=sflag, size = 0x8, scoped, tag = 'scoped memory for tpu_custom_call.1']
    #allocation8 [shape = 'u8[524288]{0}', space=vmem, size = 0x80000, scoped, tag = 'input window, operand 2']
    #allocation9 [shape = 'u8[1024]{0}', space=vmem, size = 0x400, scoped, tag = 'input window, operand 3, single buffered']
    #allocation10 [shape = 's32[1]{0}', space=sflag, size = 0x4, scoped, tag = 'scoped memory for tpu_custom_call.1']
    #allocation11 [shape = 'u8[1024]{0}', space=vmem, size = 0x400, scoped, tag = 'input window, operand 4, single buffered']
    #allocation12 [shape = 'u8[8192]{0}', space=vmem, size = 0x2000, scoped, tag = 'output window, operand 0, single buffered']
    %10 = vsyncpa [#allocation4], 0
    %11 = vsyncpa [#allocation7], 0
    %s12 = scalar_lea.sflag [#allocation7], 1
    %13 = vsyncpa %s12, 0
    %14 = vsyncpa [#allocation10], 0
    %15 = vsyncpa [#allocation5], 0
    loop: start=0, step=1, limit=4
    $region2: #{tpu_custom_call.1} parent=1 // loop_pre_header
      _
    $region3: #{tpu_custom_call.1} parent=1 // loop_header
      %s17 = sphi 0, %s21
      %p18 = scmp.ge.s32.totalorder %s17, 4
      %s24 = sphi 0, %s36
      %s25 = sphi 0, %s32
      %s26 = sphi 0, %s24
      %s27 = sphi 0, %s25
      %s28 = sphi 0, %s26
      %s29 = sphi 0, %s27
      %s39 = sphi 0, %s41
      %s42 = sphi 0, %s39
      %s43 = sphi 0, %s42
      %s59 = sphi 0, %s43
      %s67 = sphi 0, %s69
      %s70 = sphi 0, %s67
      %s71 = sphi 0, %s70
      %s87 = sphi 0, %s71
      %s93 = sphi 0, %s95
      %s96 = sphi 0, %s93
      %s97 = sphi 0, %s96
      %s113 = sphi 0, %s97
      %s117 = sphi 0, %s117
      %s119 = sphi 0, %s117
      %s120 = sphi 0, %s119
      %s134 = sphi 0, %s120
      %s138 = sphi 0, %s138
      %s140 = sphi 0, %s138
      %s141 = sphi 0, %s140
      %s155 = sphi 0, %s141
      %s161 = sphi 0, %s163
      %s164 = sphi 0, %s161
      %s165 = sphi 0, %s164
      %s181 = sphi 0, %s165
    $region4: #{tpu_custom_call.1} parent=1 // loop_header_branch
      %20 = sbr.rel (%p18) target = $region8
    $region5: #{tpu_custom_call.1} parent=1 // loop_body
      %s22 = ssub.s32 %s17, 1
      %s23 = ssub.s32 %s17, 2
      %s30 = sadd.s32 1, %s25
      %p31 = scmp.ge.s32.totalorder %s30, 2
      %s32 = scalar_select %p31, 0, %s30
      %s33 = sadd.s32 1, %s24
      %s34 = scalar_select %p31, %s33, %s24
      %p35 = scmp.ge.s32.totalorder %s34, 1
      %s36 = scalar_select %p35, 0, %s34
      %s37 = ssub.s32 %s24, %s36
      %p38 = scmp.eq.s32.totalorder %s37, 0
      %s40 = sadd.s32 %s39, 1
      %s41 = scalar_select %p38, %s39, %s40
      %p44 = pneg %p38
      %p45 = scmp.eq.s32.totalorder %s17, 1
      %p46 = por %p44, %p45
      %p47 = scmp.ne.s32.totalorder %s39, %s42
      %p48 = scmp.eq.s32.totalorder %s17, 0
      %p49 = por %p47, %p48
      %p50 = scmp.ne.s32.totalorder %s39, %s42
      %p51 = scmp.eq.s32.totalorder %s22, 1
      %p52 = por %p50, %p51
      %p53 = scmp.ne.s32.totalorder %s42, %s43
      %p54 = scmp.eq.s32.totalorder %s22, 0
      %p55 = por %p53, %p54
      %p56 = scmp.ne.s32.totalorder %s42, %s43
      %p57 = scmp.eq.s32.totalorder %s23, 1
      %p58 = por %p56, %p57
      %p60 = scmp.ne.s32.totalorder %s43, %s59
      %p61 = scmp.eq.s32.totalorder %s23, 0
      %p62 = por %p60, %p61
      %s63 = ssub.s32 %s25, %s32
      %s64 = ssub.s32 %s24, %s36
      %s65 = sor.u32 %s63, %s64
      %p66 = scmp.eq.s32.totalorder %s65, 0
      %s68 = sadd.s32 %s67, 1
      %s69 = scalar_select %p66, %s67, %s68
      %p72 = pneg %p66
      %p73 = scmp.eq.s32.totalorder %s17, 1
      %p74 = por %p72, %p73
      %p75 = scmp.ne.s32.totalorder %s67, %s70
      %p76 = scmp.eq.s32.totalorder %s17, 0
      %p77 = por %p75, %p76
      %p78 = scmp.ne.s32.totalorder %s67, %s70
      %p79 = scmp.eq.s32.totalorder %s22, 1
      %p80 = por %p78, %p79
      %p81 = scmp.ne.s32.totalorder %s70, %s71
      %p82 = scmp.eq.s32.totalorder %s22, 0
      %p83 = por %p81, %p82
      %p84 = scmp.ne.s32.totalorder %s70, %s71
      %p85 = scmp.eq.s32.totalorder %s23, 1
      %p86 = por %p84, %p85
      %p88 = scmp.ne.s32.totalorder %s71, %s87
      %p89 = scmp.eq.s32.totalorder %s23, 0
      %p90 = por %p88, %p89
      %s91 = ssub.s32 %s25, %s32
      %p92 = scmp.eq.s32.totalorder %s91, 0
      %s94 = sadd.s32 %s93, 1
      %s95 = scalar_select %p92, %s93, %s94
      %p98 = pneg %p92
      %p99 = scmp.eq.s32.totalorder %s17, 1
      %p100 = por %p98, %p99
      %p101 = scmp.ne.s32.totalorder %s93, %s96
      %p102 = scmp.eq.s32.totalorder %s17, 0
      %p103 = por %p101, %p102
      %p104 = scmp.ne.s32.totalorder %s93, %s96
      %p105 = scmp.eq.s32.totalorder %s22, 1
      %p106 = por %p104, %p105
      %p107 = scmp.ne.s32.totalorder %s96, %s97
      %p108 = scmp.eq.s32.totalorder %s22, 0
      %p109 = por %p107, %p108
      %p110 = scmp.ne.s32.totalorder %s96, %s97
      %p111 = scmp.eq.s32.totalorder %s23, 1
      %p112 = por %p110, %p111
      %p114 = scmp.ne.s32.totalorder %s97, %s113
      %p115 = scmp.eq.s32.totalorder %s23, 0
      %p116 = por %p114, %p115
      %s118 = sadd.s32 %s117, 1
      %p121 = scmp.eq.s32.totalorder %s17, 1
      %p122 = scmp.ne.s32.totalorder %s117, %s119
      %p123 = scmp.eq.s32.totalorder %s17, 0
      %p124 = por %p122, %p123
      %p125 = scmp.ne.s32.totalorder %s117, %s119
      %p126 = scmp.eq.s32.totalorder %s22, 1
      %p127 = por %p125, %p126
      %p128 = scmp.ne.s32.totalorder %s119, %s120
      %p129 = scmp.eq.s32.totalorder %s22, 0
      %p130 = por %p128, %p129
      %p131 = scmp.ne.s32.totalorder %s119, %s120
      %p132 = scmp.eq.s32.totalorder %s23, 1
      %p133 = por %p131, %p132
      %p135 = scmp.ne.s32.totalorder %s120, %s134
      %p136 = scmp.eq.s32.totalorder %s23, 0
      %p137 = por %p135, %p136
      %s139 = sadd.s32 %s138, 1
      %p142 = scmp.eq.s32.totalorder %s17, 1
      %p143 = scmp.ne.s32.totalorder %s138, %s140
      %p144 = scmp.eq.s32.totalorder %s17, 0
      %p145 = por %p143, %p144
      %p146 = scmp.ne.s32.totalorder %s138, %s140
      %p147 = scmp.eq.s32.totalorder %s22, 1
      %p148 = por %p146, %p147
      %p149 = scmp.ne.s32.totalorder %s140, %s141
      %p150 = scmp.eq.s32.totalorder %s22, 0
      %p151 = por %p149, %p150
      %p152 = scmp.ne.s32.totalorder %s140, %s141
      %p153 = scmp.eq.s32.totalorder %s23, 1
      %p154 = por %p152, %p153
      %p156 = scmp.ne.s32.totalorder %s141, %s155
      %p157 = scmp.eq.s32.totalorder %s23, 0
      %p158 = por %p156, %p157
      %s159 = ssub.s32 %s24, %s36
      %p160 = scmp.eq.s32.totalorder %s159, 0
      %s162 = sadd.s32 %s161, 1
      %s163 = scalar_select %p160, %s161, %s162
      %p166 = pneg %p160
      %p167 = scmp.eq.s32.totalorder %s17, 1
      %p168 = por %p166, %p167
      %p169 = scmp.ne.s32.totalorder %s161, %s164
      %p170 = scmp.eq.s32.totalorder %s17, 0
      %p171 = por %p169, %p170
      %p172 = scmp.ne.s32.totalorder %s161, %s164
      %p173 = scmp.eq.s32.totalorder %s22, 1
      %p174 = por %p172, %p173
      %p175 = scmp.ne.s32.totalorder %s164, %s165
      %p176 = scmp.eq.s32.totalorder %s22, 0
      %p177 = por %p175, %p176
      %p178 = scmp.ne.s32.totalorder %s164, %s165
      %p179 = scmp.eq.s32.totalorder %s23, 1
      %p180 = por %p178, %p179
      %p182 = scmp.ne.s32.totalorder %s165, %s181
      %p183 = scmp.eq.s32.totalorder %s23, 0
      %p184 = por %p182, %p183
      %p185 = scmp.le.s32.totalorder 1, %s17
      %p186 = scmp.lt.s32.totalorder %s17, 3
      %p187 = pnand %p185, %p186
      %p188 = pneg %p187
      // Predicated region
      $region9: #{tpu_custom_call.1} parent=5 // pred_check
        _
      $region10: #{tpu_custom_call.1} parent=5 // pred_check_branch
        %190 = sbr.rel (%p187) target = $region12
      $region11: #{tpu_custom_call.1} parent=5 // pred_region
        %s191 = ssub.s32 %s17, 1
        // Predicated region
        $region13: #{tpu_custom_call.1} parent=11 // pred_check
          %p192 = pneg %p55
        $region14: #{tpu_custom_call.1} parent=11 // pred_check_branch
          %194 = sbr.rel (%p192) target = $region16
        $region15: #{tpu_custom_call.1} parent=11 // pred_region
          %s195 = smul.u32 2, %s26
          %s197 = ssub.s32 256, 256
          %198 = vsyncadd [#allocation4], %s197
          %s199 = smul.addr %s195, 128
          %s200 = scalar_lea.hbm %s0, %s199
          %s201 = sshll.u32 [#allocation3], 4
          %s202 = int_to_ptr.vmem [resolvable:$true] %s201
          %207 = dma.hbm_to_vmem [thread:$0]  %s200, 256, %s202, [#allocation4], 128, 128, 8
        $region16: #{tpu_custom_call.1} parent=11 // pred_fallthru
          _
        // Predicated region
        $region17: #{tpu_custom_call.1} parent=11 // pred_check
          %p208 = pneg %p130
        $region18: #{tpu_custom_call.1} parent=11 // pred_check_branch
          %210 = sbr.rel (%p208) target = $region20
        $region19: #{tpu_custom_call.1} parent=11 // pred_region
          %s212 = ssub.s32 32, 32
          %213 = vsyncadd [#allocation10], %s212
          %s215 = sshll.u32 [#allocation9], 4
          %s216 = int_to_ptr.vmem [resolvable:$true] %s215
          %218 = dma.hbm_to_vmem [thread:$0]  %s3, 32, %s216, [#allocation10]
        $region20: #{tpu_custom_call.1} parent=11 // pred_fallthru
          _
        // Predicated region
        $region21: #{tpu_custom_call.1} parent=11 // pred_check
          %p219 = pneg %p151
        $region22: #{tpu_custom_call.1} parent=11 // pred_check_branch
          %221 = sbr.rel (%p219) target = $region24
        $region23: #{tpu_custom_call.1} parent=11 // pred_region
          %s223 = ssub.s32 32, 32
          %224 = vsyncadd [#allocation10], %s223
          %s226 = sshll.u32 [#allocation11], 4
          %s227 = int_to_ptr.vmem [resolvable:$true] %s226
          %229 = dma.hbm_to_vmem [thread:$0]  %s4, 32, %s227, [#allocation10]
        $region24: #{tpu_custom_call.1} parent=11 // pred_fallthru
          _
      $region12: #{tpu_custom_call.1} parent=5 // pred_fallthru
        _
      %p230 = scmp.lt.s32.totalorder %s17, 2
      // Predicated region
      $region25: #{tpu_custom_call.1} parent=5 // pred_check
        %p231 = pneg %p230
      $region26: #{tpu_custom_call.1} parent=5 // pred_check_branch
        %233 = sbr.rel (%p231) target = $region28
      $region27: #{tpu_custom_call.1} parent=5 // pred_region
        // Predicated region
        $region29: #{tpu_custom_call.1} parent=27 // pred_check
          %p234 = pneg %p77
        $region30: #{tpu_custom_call.1} parent=27 // pred_check_branch
          %236 = sbr.rel (%p234) target = $region32
        $region31: #{tpu_custom_call.1} parent=27 // pred_region
          %s237 = sand.u32 %s17, 1
          %s238 = scalar_lea.sflag [#allocation7], %s237
          %s239 = sand.u32 %s67, 1
          %s240 = smul.addr %s239, 16
          %s241 = scalar_lea.vmem [#allocation6], %s240
          %s242 = smul.u32 2, %s24
          %s244 = ssub.s32 256, 256
          %245 = vsyncadd %s238, %s244
          %s246 = smul.addr %s25, 2
          %s247 = sadd.s32 %s242, %s246
          %s248 = smul.addr %s247, 128
          %s249 = scalar_lea.hbm %s1, %s248
          %s250 = sshll.u32 %s241, 4
          %s251 = int_to_ptr.vmem [resolvable:$true] %s250
          %256 = dma.hbm_to_vmem [thread:$0]  %s249, 256, %s251, %s238, 128, 128, 8
        $region32: #{tpu_custom_call.1} parent=27 // pred_fallthru
          _
        // Predicated region
        $region33: #{tpu_custom_call.1} parent=27 // pred_check
          %p257 = pneg %p103
        $region34: #{tpu_custom_call.1} parent=27 // pred_check_branch
          %259 = sbr.rel (%p257) target = $region36
        $region35: #{tpu_custom_call.1} parent=27 // pred_region
          %s260 = sand.u32 %s17, 1
          %s261 = scalar_lea.sflag [#allocation7], %s260
          %s262 = sand.u32 %s93, 1
          %s263 = smul.addr %s262, 512
          %s264 = scalar_lea.vmem [#allocation8], %s263
          %s265 = smul.u32 128, %s25
          %s267 = ssub.s32 8192, 8192
          %268 = vsyncadd %s261, %s267
          %s269 = smul.addr %s265, 64
          %s270 = scalar_lea.hbm %s2, %s269
          %s271 = sshll.u32 %s264, 4
          %s272 = int_to_ptr.vmem [resolvable:$true] %s271
          %277 = dma.hbm_to_vmem [thread:$0]  %s270, 8192, %s272, %s261, 64, 64, 4
        $region36: #{tpu_custom_call.1} parent=27 // pred_fallthru
          _
      $region28: #{tpu_custom_call.1} parent=5 // pred_fallthru
        _
      %p278 = scmp.le.s32.totalorder 1, %s17
      %p279 = scmp.lt.s32.totalorder %s17, 3
      %p280 = pnand %p278, %p279
      %p281 = pneg %p280
      // Predicated region
      $region37: #{tpu_custom_call.1} parent=5 // pred_check
        _
      $region38: #{tpu_custom_call.1} parent=5 // pred_check_branch
        %283 = sbr.rel (%p280) target = $region40
      $region39: #{tpu_custom_call.1} parent=5 // pred_region
        %s284 = ssub.s32 %s17, 1
        // Predicated region
        $region41: #{tpu_custom_call.1} parent=39 // pred_check
          %p285 = pneg %p55
        $region42: #{tpu_custom_call.1} parent=39 // pred_check_branch
          %287 = sbr.rel (%p285) target = $region44
        $region43: #{tpu_custom_call.1} parent=39 // pred_region
          %288 = dma.done [#allocation4], 256
        $region44: #{tpu_custom_call.1} parent=39 // pred_fallthru
          _
        %s289 = sand.u32 %s22, 1
        %s290 = scalar_lea.sflag [#allocation7], %s289
        %s291 = sand.u32 %s70, 1
        %s292 = smul.addr %s291, 16
        %s293 = scalar_lea.vmem [#allocation6], %s292
        // Predicated region
        $region45: #{tpu_custom_call.1} parent=39 // pred_check
          %p294 = pneg %p83
        $region46: #{tpu_custom_call.1} parent=39 // pred_check_branch
          %296 = sbr.rel (%p294) target = $region48
        $region47: #{tpu_custom_call.1} parent=39 // pred_region
          %297 = dma.done %s290, 256
        $region48: #{tpu_custom_call.1} parent=39 // pred_fallthru
          _
        %s298 = sand.u32 %s22, 1
        %s299 = scalar_lea.sflag [#allocation7], %s298
        %s300 = sand.u32 %s96, 1
        %s301 = smul.addr %s300, 512
        %s302 = scalar_lea.vmem [#allocation8], %s301
        // Predicated region
        $region49: #{tpu_custom_call.1} parent=39 // pred_check
          %p303 = pneg %p109
        $region50: #{tpu_custom_call.1} parent=39 // pred_check_branch
          %305 = sbr.rel (%p303) target = $region52
        $region51: #{tpu_custom_call.1} parent=39 // pred_region
          %306 = dma.done %s299, 8192
        $region52: #{tpu_custom_call.1} parent=39 // pred_fallthru
          _
        // Predicated region
        $region53: #{tpu_custom_call.1} parent=39 // pred_check
          %p307 = pneg %p130
        $region54: #{tpu_custom_call.1} parent=39 // pred_check_branch
          %309 = sbr.rel (%p307) target = $region56
        $region55: #{tpu_custom_call.1} parent=39 // pred_region
          %310 = dma.done [#allocation10], 32
        $region56: #{tpu_custom_call.1} parent=39 // pred_fallthru
          _
        // Predicated region
        $region57: #{tpu_custom_call.1} parent=39 // pred_check
          %p311 = pneg %p151
        $region58: #{tpu_custom_call.1} parent=39 // pred_check_branch
          %313 = sbr.rel (%p311) target = $region60
        $region59: #{tpu_custom_call.1} parent=39 // pred_region
          %314 = dma.done [#allocation10], 32
        $region60: #{tpu_custom_call.1} parent=39 // pred_fallthru
          _
        %p315 = pneg %p55
        %p316 = pneg %p52
        %s317 = sand.u32 %s22, 1
        %s318 = scalar_lea.sflag [#allocation7], %s317
        %s319 = sand.u32 %s70, 1
        %s320 = smul.addr %s319, 16
        %s321 = scalar_lea.vmem [#allocation6], %s320
        %p322 = pneg %p83
        %p323 = pneg %p80
        %s324 = sand.u32 %s22, 1
        %s325 = scalar_lea.sflag [#allocation7], %s324
        %s326 = sand.u32 %s96, 1
        %s327 = smul.addr %s326, 512
        %s328 = scalar_lea.vmem [#allocation8], %s327
        %p329 = pneg %p109
        %p330 = pneg %p106
        %p331 = pneg %p130
        %p332 = pneg %p127
        %p333 = pneg %p151
        %p334 = pneg %p148
        %p335 = pneg %p177
        %p336 = pneg %p174
        %s337 = smul.u32 2, %s26
        %s338 = smul.u32 2, %s26
        %s339 = smul.u32 128, %s27
        %s340 = smul.u32 2, %s26
        %p342 = scmp.eq.s32.totalorder %s27, 0
        // Predicated region
        $region61: #{tpu_custom_call.1} parent=39 // pred_check
          %p343 = pneg %p342
        $region62: #{tpu_custom_call.1} parent=39 // pred_check_branch
          %345 = sbr.rel (%p343) target = $region64
        $region63: #{tpu_custom_call.1} parent=39 // pred_region
          %346 = vst [vmem:[#allocation2] sm:$0xff] 0.0
          %347 = vst [vmem:[#allocation2 + $0x8] sm:$0xff] 0.0
        $region64: #{tpu_custom_call.1} parent=39 // pred_fallthru
          _
        %v348 = vld [vmem:[#allocation3] sm:$0xff]
        %v349 = vld [vmem:[#allocation3 + $0x8] sm:$0xff]
        %v350 = vld [vmem:[#allocation9] sm:$0x1]
        %v351 = vlaneseq
        %v352 = vshrl.u32 %v351, 7
        %v353 = vsub.s32 0, %v352
        %v354 = vrot.slane %v350, %v353
        %v355 = vmul.f32 %v348, %v354
        %v356 = vmul.f32 %v349, %v354
        %v357 = vld [vmem:[#allocation9 + $0x1] sm:$0x1]
        %v358 = vlaneseq
        %v359 = vshrl.u32 %v358, 7
        %v360 = vsub.s32 0, %v359
        %v361 = vrot.slane %v357, %v360
        %v362 = vadd.f32 %v355, %v361
        %v363 = vadd.f32 %v356, %v361
        %v364 = vld [vmem:[%s293] sm:$0xff]
        %v365 = vld [vmem:[%s293 + $0x8] sm:$0xff]
        %367 = vset.pattern.permute.xlu0 0
        %368 = vperm.xlu0 %367, %v364
        %v369 = vpop.permute.xlu0 %368
        %372 = vset.pattern.permute.xlu0 0
        %373 = vperm.xlu0 %372, %v365
        %v374 = vpop.permute.xlu0 %373
        %v376 = vmul.f32 %v369, %v362
        %v377 = vmul.f32 %v374, %v363
        %378 = vset.pattern.permute.xlu0 1
        %379 = vperm.xlu0 %378, %v364
        %v380 = vpop.permute.xlu0 %379
        %382 = vset.pattern.permute.xlu0 1
        %383 = vperm.xlu0 %382, %v365
        %v384 = vpop.permute.xlu0 %383
        %v386 = vmul.f32 %v380, %v362
        %v387 = vmul.f32 %v384, %v363
        %388 = vset.pattern.permute.xlu0 2
        %389 = vperm.xlu0 %388, %v364
        %v390 = vpop.permute.xlu0 %389
        %392 = vset.pattern.permute.xlu0 2
        %393 = vperm.xlu0 %392, %v365
        %v394 = vpop.permute.xlu0 %393
        %v396 = vmul.f32 %v390, %v362
        %v397 = vmul.f32 %v394, %v363
        %398 = vset.pattern.permute.xlu0 3
        %399 = vperm.xlu0 %398, %v364
        %v400 = vpop.permute.xlu0 %399
        %402 = vset.pattern.permute.xlu0 3
        %403 = vperm.xlu0 %402, %v365
        %v404 = vpop.permute.xlu0 %403
        %v406 = vmul.f32 %v400, %v362
        %v407 = vmul.f32 %v404, %v363
        %408 = vset.pattern.permute.xlu0 4
        %409 = vperm.xlu0 %408, %v364
        %v410 = vpop.permute.xlu0 %409
        %412 = vset.pattern.permute.xlu0 4
        %413 = vperm.xlu0 %412, %v365
        %v414 = vpop.permute.xlu0 %413
        %v416 = vmul.f32 %v410, %v362
        %v417 = vmul.f32 %v414, %v363
        %418 = vset.pattern.permute.xlu0 5
        %419 = vperm.xlu0 %418, %v364
        %v420 = vpop.permute.xlu0 %419
        %422 = vset.pattern.permute.xlu0 5
        %423 = vperm.xlu0 %422, %v365
        %v424 = vpop.permute.xlu0 %423
        %v426 = vmul.f32 %v420, %v362
        %v427 = vmul.f32 %v424, %v363
        %428 = vset.pattern.permute.xlu0 6
        %429 = vperm.xlu0 %428, %v364
        %v430 = vpop.permute.xlu0 %429
        %432 = vset.pattern.permute.xlu0 6
        %433 = vperm.xlu0 %432, %v365
        %v434 = vpop.permute.xlu0 %433
        %v436 = vmul.f32 %v430, %v362
        %v437 = vmul.f32 %v434, %v363
        %438 = vset.pattern.permute.xlu0 7
        %439 = vperm.xlu0 %438, %v364
        %v440 = vpop.permute.xlu0 %439
        %442 = vset.pattern.permute.xlu0 7
        %443 = vperm.xlu0 %442, %v365
        %v444 = vpop.permute.xlu0 %443
        %v446 = vmul.f32 %v440, %v362
        %v447 = vmul.f32 %v444, %v363
        %v448 = vld [vmem:[#allocation2] sm:$0xff]
        %v449 = vld [vmem:[#allocation2 + $0x8] sm:$0xff]
        %v450 = vpack.c.bf16 %v377, %v376
        %v451 = vpack.c.bf16 %v387, %v386
        %v452 = vpack.c.bf16 %v397, %v396
        %v453 = vpack.c.bf16 %v407, %v406
        %v454 = vpack.c.bf16 %v417, %v416
        %v455 = vpack.c.bf16 %v427, %v426
        %v456 = vpack.c.bf16 %v437, %v436
        %v457 = vpack.c.bf16 %v447, %v446
        %v458 = vld [vmem:[%s302] sm:$0xf]
        %v459 = vld [vmem:[%s302 + $0x4] sm:$0xf]
        %v460 = vld [vmem:[%s302 + $0x8] sm:$0xf]
        %v461 = vld [vmem:[%s302 + $0xc] sm:$0xf]
        %v462 = vld [vmem:[%s302 + $0x10] sm:$0xf]
        %v463 = vld [vmem:[%s302 + $0x14] sm:$0xf]
        %v464 = vld [vmem:[%s302 + $0x18] sm:$0xf]
        %v465 = vld [vmem:[%s302 + $0x1c] sm:$0xf]
        %v466 = vld [vmem:[%s302 + $0x20] sm:$0xf]
        %v467 = vld [vmem:[%s302 + $0x24] sm:$0xf]
        %v468 = vld [vmem:[%s302 + $0x28] sm:$0xf]
        %v469 = vld [vmem:[%s302 + $0x2c] sm:$0xf]
        %v470 = vld [vmem:[%s302 + $0x30] sm:$0xf]
        %v471 = vld [vmem:[%s302 + $0x34] sm:$0xf]
        %v472 = vld [vmem:[%s302 + $0x38] sm:$0xf]
        %v473 = vld [vmem:[%s302 + $0x3c] sm:$0xf]
        %v474 = vld [vmem:[%s302 + $0x40] sm:$0xf]
        %v475 = vld [vmem:[%s302 + $0x44] sm:$0xf]
        %v476 = vld [vmem:[%s302 + $0x48] sm:$0xf]
        %v477 = vld [vmem:[%s302 + $0x4c] sm:$0xf]
        %v478 = vld [vmem:[%s302 + $0x50] sm:$0xf]
        %v479 = vld [vmem:[%s302 + $0x54] sm:$0xf]
        %v480 = vld [vmem:[%s302 + $0x58] sm:$0xf]
        %v481 = vld [vmem:[%s302 + $0x5c] sm:$0xf]
        %v482 = vld [vmem:[%s302 + $0x60] sm:$0xf]
        %v483 = vld [vmem:[%s302 + $0x64] sm:$0xf]
        %v484 = vld [vmem:[%s302 + $0x68] sm:$0xf]
        %v485 = vld [vmem:[%s302 + $0x6c] sm:$0xf]
        %v486 = vld [vmem:[%s302 + $0x70] sm:$0xf]
        %v487 = vld [vmem:[%s302 + $0x74] sm:$0xf]
        %v488 = vld [vmem:[%s302 + $0x78] sm:$0xf]
        %v489 = vld [vmem:[%s302 + $0x7c] sm:$0xf]
        %v490 = vld [vmem:[%s302 + $0x80] sm:$0xf]
        %v491 = vld [vmem:[%s302 + $0x84] sm:$0xf]
        %v492 = vld [vmem:[%s302 + $0x88] sm:$0xf]
        %v493 = vld [vmem:[%s302 + $0x8c] sm:$0xf]
        %v494 = vld [vmem:[%s302 + $0x90] sm:$0xf]
        %v495 = vld [vmem:[%s302 + $0x94] sm:$0xf]
        %v496 = vld [vmem:[%s302 + $0x98] sm:$0xf]
        %v497 = vld [vmem:[%s302 + $0x9c] sm:$0xf]
        %v498 = vld [vmem:[%s302 + $0xa0] sm:$0xf]
        %v499 = vld [vmem:[%s302 + $0xa4] sm:$0xf]
        %v500 = vld [vmem:[%s302 + $0xa8] sm:$0xf]
        %v501 = vld [vmem:[%s302 + $0xac] sm:$0xf]
        %v502 = vld [vmem:[%s302 + $0xb0] sm:$0xf]
        %v503 = vld [vmem:[%s302 + $0xb4] sm:$0xf]
        %v504 = vld [vmem:[%s302 + $0xb8] sm:$0xf]
        %v505 = vld [vmem:[%s302 + $0xbc] sm:$0xf]
        %v506 = vld [vmem:[%s302 + $0xc0] sm:$0xf]
        %v507 = vld [vmem:[%s302 + $0xc4] sm:$0xf]
        %v508 = vld [vmem:[%s302 + $0xc8] sm:$0xf]
        %v509 = vld [vmem:[%s302 + $0xcc] sm:$0xf]
        %v510 = vld [vmem:[%s302 + $0xd0] sm:$0xf]
        %v511 = vld [vmem:[%s302 + $0xd4] sm:$0xf]
        %v512 = vld [vmem:[%s302 + $0xd8] sm:$0xf]
        %v513 = vld [vmem:[%s302 + $0xdc] sm:$0xf]
        %v514 = vld [vmem:[%s302 + $0xe0] sm:$0xf]
        %v515 = vld [vmem:[%s302 + $0xe4] sm:$0xf]
        %v516 = vld [vmem:[%s302 + $0xe8] sm:$0xf]
        %v517 = vld [vmem:[%s302 + $0xec] sm:$0xf]
        %v518 = vld [vmem:[%s302 + $0xf0] sm:$0xf]
        %v519 = vld [vmem:[%s302 + $0xf4] sm:$0xf]
        %v520 = vld [vmem:[%s302 + $0xf8] sm:$0xf]
        %v521 = vld [vmem:[%s302 + $0xfc] sm:$0xf]
        %v522 = vld [vmem:[%s302 + $0x100] sm:$0xf]
        %v523 = vld [vmem:[%s302 + $0x104] sm:$0xf]
        %v524 = vld [vmem:[%s302 + $0x108] sm:$0xf]
        %v525 = vld [vmem:[%s302 + $0x10c] sm:$0xf]
        %v526 = vld [vmem:[%s302 + $0x110] sm:$0xf]
        %v527 = vld [vmem:[%s302 + $0x114] sm:$0xf]
        %v528 = vld [vmem:[%s302 + $0x118] sm:$0xf]
        %v529 = vld [vmem:[%s302 + $0x11c] sm:$0xf]
        %v530 = vld [vmem:[%s302 + $0x120] sm:$0xf]
        %v531 = vld [vmem:[%s302 + $0x124] sm:$0xf]
        %v532 = vld [vmem:[%s302 + $0x128] sm:$0xf]
        %v533 = vld [vmem:[%s302 + $0x12c] sm:$0xf]
        %v534 = vld [vmem:[%s302 + $0x130] sm:$0xf]
        %v535 = vld [vmem:[%s302 + $0x134] sm:$0xf]
        %v536 = vld [vmem:[%s302 + $0x138] sm:$0xf]
        %v537 = vld [vmem:[%s302 + $0x13c] sm:$0xf]
        %v538 = vld [vmem:[%s302 + $0x140] sm:$0xf]
        %v539 = vld [vmem:[%s302 + $0x144] sm:$0xf]
        %v540 = vld [vmem:[%s302 + $0x148] sm:$0xf]
        %v541 = vld [vmem:[%s302 + $0x14c] sm:$0xf]
        %v542 = vld [vmem:[%s302 + $0x150] sm:$0xf]
        %v543 = vld [vmem:[%s302 + $0x154] sm:$0xf]
        %v544 = vld [vmem:[%s302 + $0x158] sm:$0xf]
        %v545 = vld [vmem:[%s302 + $0x15c] sm:$0xf]
        %v546 = vld [vmem:[%s302 + $0x160] sm:$0xf]
        %v547 = vld [vmem:[%s302 + $0x164] sm:$0xf]
        %v548 = vld [vmem:[%s302 + $0x168] sm:$0xf]
        %v549 = vld [vmem:[%s302 + $0x16c] sm:$0xf]
        %v550 = vld [vmem:[%s302 + $0x170] sm:$0xf]
        %v551 = vld [vmem:[%s302 + $0x174] sm:$0xf]
        %v552 = vld [vmem:[%s302 + $0x178] sm:$0xf]
        %v553 = vld [vmem:[%s302 + $0x17c] sm:$0xf]
        %v554 = vld [vmem:[%s302 + $0x180] sm:$0xf]
        %v555 = vld [vmem:[%s302 + $0x184] sm:$0xf]
        %v556 = vld [vmem:[%s302 + $0x188] sm:$0xf]
        %v557 = vld [vmem:[%s302 + $0x18c] sm:$0xf]
        %v558 = vld [vmem:[%s302 + $0x190] sm:$0xf]
        %v559 = vld [vmem:[%s302 + $0x194] sm:$0xf]
        %v560 = vld [vmem:[%s302 + $0x198] sm:$0xf]
        %v561 = vld [vmem:[%s302 + $0x19c] sm:$0xf]
        %v562 = vld [vmem:[%s302 + $0x1a0] sm:$0xf]
        %v563 = vld [vmem:[%s302 + $0x1a4] sm:$0xf]
        %v564 = vld [vmem:[%s302 + $0x1a8] sm:$0xf]
        %v565 = vld [vmem:[%s302 + $0x1ac] sm:$0xf]
        %v566 = vld [vmem:[%s302 + $0x1b0] sm:$0xf]
        %v567 = vld [vmem:[%s302 + $0x1b4] sm:$0xf]
        %v568 = vld [vmem:[%s302 + $0x1b8] sm:$0xf]
        %v569 = vld [vmem:[%s302 + $0x1bc] sm:$0xf]
        %v570 = vld [vmem:[%s302 + $0x1c0] sm:$0xf]
        %v571 = vld [vmem:[%s302 + $0x1c4] sm:$0xf]
        %v572 = vld [vmem:[%s302 + $0x1c8] sm:$0xf]
        %v573 = vld [vmem:[%s302 + $0x1cc] sm:$0xf]
        %v574 = vld [vmem:[%s302 + $0x1d0] sm:$0xf]
        %v575 = vld [vmem:[%s302 + $0x1d4] sm:$0xf]
        %v576 = vld [vmem:[%s302 + $0x1d8] sm:$0xf]
        %v577 = vld [vmem:[%s302 + $0x1dc] sm:$0xf]
        %v578 = vld [vmem:[%s302 + $0x1e0] sm:$0xf]
        %v579 = vld [vmem:[%s302 + $0x1e4] sm:$0xf]
        %v580 = vld [vmem:[%s302 + $0x1e8] sm:$0xf]
        %v581 = vld [vmem:[%s302 + $0x1ec] sm:$0xf]
        %v582 = vld [vmem:[%s302 + $0x1f0] sm:$0xf]
        %v583 = vld [vmem:[%s302 + $0x1f4] sm:$0xf]
        %v584 = vld [vmem:[%s302 + $0x1f8] sm:$0xf]
        %v585 = vld [vmem:[%s302 + $0x1fc] sm:$0xf]
        %v714 = vunpack.c.l.b16 %v458
        %v715 = vunpack.c.l.b16 %v459
        %v716 = vunpack.c.l.b16 %v460
        %v717 = vunpack.c.l.b16 %v461
        %v718 = vunpack.c.l.b16 %v462
        %v719 = vunpack.c.l.b16 %v463
        %v720 = vunpack.c.l.b16 %v464
        %v721 = vunpack.c.l.b16 %v465
        %v722 = vunpack.c.l.b16 %v466
        %v723 = vunpack.c.l.b16 %v467
        %v724 = vunpack.c.l.b16 %v468
        %v725 = vunpack.c.l.b16 %v469
        %v726 = vunpack.c.l.b16 %v470
        %v727 = vunpack.c.l.b16 %v471
        %v728 = vunpack.c.l.b16 %v472
        %v729 = vunpack.c.l.b16 %v473
        %v730 = vunpack.c.l.b16 %v474
        %v731 = vunpack.c.l.b16 %v475
        %v732 = vunpack.c.l.b16 %v476
        %v733 = vunpack.c.l.b16 %v477
        %v734 = vunpack.c.l.b16 %v478
        %v735 = vunpack.c.l.b16 %v479
        %v736 = vunpack.c.l.b16 %v480
        %v737 = vunpack.c.l.b16 %v481
        %v738 = vunpack.c.l.b16 %v482
        %v739 = vunpack.c.l.b16 %v483
        %v740 = vunpack.c.l.b16 %v484
        %v741 = vunpack.c.l.b16 %v485
        %v742 = vunpack.c.l.b16 %v486
        %v743 = vunpack.c.l.b16 %v487
        %v744 = vunpack.c.l.b16 %v488
        %v745 = vunpack.c.l.b16 %v489
        %v746 = vunpack.c.l.b16 %v490
        %v747 = vunpack.c.l.b16 %v491
        %v748 = vunpack.c.l.b16 %v492
        %v749 = vunpack.c.l.b16 %v493
        %v750 = vunpack.c.l.b16 %v494
        %v751 = vunpack.c.l.b16 %v495
        %v752 = vunpack.c.l.b16 %v496
        %v753 = vunpack.c.l.b16 %v497
        %v754 = vunpack.c.l.b16 %v498
        %v755 = vunpack.c.l.b16 %v499
        %v756 = vunpack.c.l.b16 %v500
        %v757 = vunpack.c.l.b16 %v501
        %v758 = vunpack.c.l.b16 %v502
        %v759 = vunpack.c.l.b16 %v503
        %v760 = vunpack.c.l.b16 %v504
        %v761 = vunpack.c.l.b16 %v505
        %v762 = vunpack.c.l.b16 %v506
        %v763 = vunpack.c.l.b16 %v507
        %v764 = vunpack.c.l.b16 %v508
        %v765 = vunpack.c.l.b16 %v509
        %v766 = vunpack.c.l.b16 %v510
        %v767 = vunpack.c.l.b16 %v511
        %v768 = vunpack.c.l.b16 %v512
        %v769 = vunpack.c.l.b16 %v513
        %v770 = vunpack.c.l.b16 %v514
        %v771 = vunpack.c.l.b16 %v515
        %v772 = vunpack.c.l.b16 %v516
        %v773 = vunpack.c.l.b16 %v517
        %v774 = vunpack.c.l.b16 %v518
        %v775 = vunpack.c.l.b16 %v519
        %v776 = vunpack.c.l.b16 %v520
        %v777 = vunpack.c.l.b16 %v521
        %v778 = vunpack.c.l.b16 %v522
        %v779 = vunpack.c.l.b16 %v523
        %v780 = vunpack.c.l.b16 %v524
        %v781 = vunpack.c.l.b16 %v525
        %v782 = vunpack.c.l.b16 %v526
        %v783 = vunpack.c.l.b16 %v527
        %v784 = vunpack.c.l.b16 %v528
        %v785 = vunpack.c.l.b16 %v529
        %v786 = vunpack.c.l.b16 %v530
        %v787 = vunpack.c.l.b16 %v531
        %v788 = vunpack.c.l.b16 %v532
        %v789 = vunpack.c.l.b16 %v533
        %v790 = vunpack.c.l.b16 %v534
        %v791 = vunpack.c.l.b16 %v535
        %v792 = vunpack.c.l.b16 %v536
        %v793 = vunpack.c.l.b16 %v537
        %v794 = vunpack.c.l.b16 %v538
        %v795 = vunpack.c.l.b16 %v539
        %v796 = vunpack.c.l.b16 %v540
        %v797 = vunpack.c.l.b16 %v541
        %v798 = vunpack.c.l.b16 %v542
        %v799 = vunpack.c.l.b16 %v543
        %v800 = vunpack.c.l.b16 %v544
        %v801 = vunpack.c.l.b16 %v545
        %v802 = vunpack.c.l.b16 %v546
        %v803 = vunpack.c.l.b16 %v547
        %v804 = vunpack.c.l.b16 %v548
        %v805 = vunpack.c.l.b16 %v549
        %v806 = vunpack.c.l.b16 %v550
        %v807 = vunpack.c.l.b16 %v551
        %v808 = vunpack.c.l.b16 %v552
        %v809 = vunpack.c.l.b16 %v553
        %v810 = vunpack.c.l.b16 %v554
        %v811 = vunpack.c.l.b16 %v555
        %v812 = vunpack.c.l.b16 %v556
        %v813 = vunpack.c.l.b16 %v557
        %v814 = vunpack.c.l.b16 %v558
        %v815 = vunpack.c.l.b16 %v559
        %v816 = vunpack.c.l.b16 %v560
        %v817 = vunpack.c.l.b16 %v561
        %v818 = vunpack.c.l.b16 %v562
        %v819 = vunpack.c.l.b16 %v563
        %v820 = vunpack.c.l.b16 %v564
        %v821 = vunpack.c.l.b16 %v565
        %v822 = vunpack.c.l.b16 %v566
        %v823 = vunpack.c.l.b16 %v567
        %v824 = vunpack.c.l.b16 %v568
        %v825 = vunpack.c.l.b16 %v569
        %v826 = vunpack.c.l.b16 %v570
        %v827 = vunpack.c.l.b16 %v571
        %v828 = vunpack.c.l.b16 %v572
        %v829 = vunpack.c.l.b16 %v573
        %v830 = vunpack.c.l.b16 %v574
        %v831 = vunpack.c.l.b16 %v575
        %v832 = vunpack.c.l.b16 %v576
        %v833 = vunpack.c.l.b16 %v577
        %v834 = vunpack.c.l.b16 %v578
        %v835 = vunpack.c.l.b16 %v579
        %v836 = vunpack.c.l.b16 %v580
        %v837 = vunpack.c.l.b16 %v581
        %v838 = vunpack.c.l.b16 %v582
        %v839 = vunpack.c.l.b16 %v583
        %v840 = vunpack.c.l.b16 %v584
        %v841 = vunpack.c.l.b16 %v585
        %v842 = vpack.c.b16 %v715, %v714
        %v843 = vpack.c.b16 %v717, %v716
        %v844 = vpack.c.b16 %v719, %v718
        %v845 = vpack.c.b16 %v721, %v720
        %v846 = vpack.c.b16 %v723, %v722
        %v847 = vpack.c.b16 %v725, %v724
        %v848 = vpack.c.b16 %v727, %v726
        %v849 = vpack.c.b16 %v729, %v728
        %v850 = vpack.c.b16 %v731, %v730
        %v851 = vpack.c.b16 %v733, %v732
        %v852 = vpack.c.b16 %v735, %v734
        %v853 = vpack.c.b16 %v737, %v736
        %v854 = vpack.c.b16 %v739, %v738
        %v855 = vpack.c.b16 %v741, %v740
        %v856 = vpack.c.b16 %v743, %v742
        %v857 = vpack.c.b16 %v745, %v744
        %v858 = vpack.c.b16 %v747, %v746
        %v859 = vpack.c.b16 %v749, %v748
        %v860 = vpack.c.b16 %v751, %v750
        %v861 = vpack.c.b16 %v753, %v752
        %v862 = vpack.c.b16 %v755, %v754
        %v863 = vpack.c.b16 %v757, %v756
        %v864 = vpack.c.b16 %v759, %v758
        %v865 = vpack.c.b16 %v761, %v760
        %v866 = vpack.c.b16 %v763, %v762
        %v867 = vpack.c.b16 %v765, %v764
        %v868 = vpack.c.b16 %v767, %v766
        %v869 = vpack.c.b16 %v769, %v768
        %v870 = vpack.c.b16 %v771, %v770
        %v871 = vpack.c.b16 %v773, %v772
        %v872 = vpack.c.b16 %v775, %v774
        %v873 = vpack.c.b16 %v777, %v776
        %v874 = vpack.c.b16 %v779, %v778
        %v875 = vpack.c.b16 %v781, %v780
        %v876 = vpack.c.b16 %v783, %v782
        %v877 = vpack.c.b16 %v785, %v784
        %v878 = vpack.c.b16 %v787, %v786
        %v879 = vpack.c.b16 %v789, %v788
        %v880 = vpack.c.b16 %v791, %v790
        %v881 = vpack.c.b16 %v793, %v792
        %v882 = vpack.c.b16 %v795, %v794
        %v883 = vpack.c.b16 %v797, %v796
        %v884 = vpack.c.b16 %v799, %v798
        %v885 = vpack.c.b16 %v801, %v800
        %v886 = vpack.c.b16 %v803, %v802
        %v887 = vpack.c.b16 %v805, %v804
        %v888 = vpack.c.b16 %v807, %v806
        %v889 = vpack.c.b16 %v809, %v808
        %v890 = vpack.c.b16 %v811, %v810
        %v891 = vpack.c.b16 %v813, %v812
        %v892 = vpack.c.b16 %v815, %v814
        %v893 = vpack.c.b16 %v817, %v816
        %v894 = vpack.c.b16 %v819, %v818
        %v895 = vpack.c.b16 %v821, %v820
        %v896 = vpack.c.b16 %v823, %v822
        %v897 = vpack.c.b16 %v825, %v824
        %v898 = vpack.c.b16 %v827, %v826
        %v899 = vpack.c.b16 %v829, %v828
        %v900 = vpack.c.b16 %v831, %v830
        %v901 = vpack.c.b16 %v833, %v832
        %v902 = vpack.c.b16 %v835, %v834
        %v903 = vpack.c.b16 %v837, %v836
        %v904 = vpack.c.b16 %v839, %v838
        %v905 = vpack.c.b16 %v841, %v840
        %970 = vmatprep.subr.bf16.mxu0 0
        %971 = vmatpush1.bf16.msra.mxu0 %v842
        %972 = vmatprep.subr.bf16.mxu0 0
        %973 = vmatpush1.bf16.msra.mxu0 %v843
        %974 = vmatprep.subr.bf16.mxu0 0
        %975 = vmatpush1.bf16.msra.mxu0 %v844
        %976 = vmatprep.subr.bf16.mxu0 0
        %977 = vmatpush1.bf16.msra.mxu0 %v845
        %978 = vmatprep.subr.bf16.mxu0 0
        %979 = vmatpush1.bf16.msra.mxu0 %v846
        %980 = vmatprep.subr.bf16.mxu0 0
        %981 = vmatpush1.bf16.msra.mxu0 %v847
        %982 = vmatprep.subr.bf16.mxu0 0
        %983 = vmatpush1.bf16.msra.mxu0 %v848
        %984 = vmatprep.subr.bf16.mxu0 0
        %985 = vmatpush1.bf16.msra.mxu0 %v849
        %986 = vmatprep.subr.bf16.mxu0 0
        %987 = vmatpush1.bf16.msra.mxu0 %v850
        %988 = vmatprep.subr.bf16.mxu0 0
        %989 = vmatpush1.bf16.msra.mxu0 %v851
        %990 = vmatprep.subr.bf16.mxu0 0
        %991 = vmatpush1.bf16.msra.mxu0 %v852
        %992 = vmatprep.subr.bf16.mxu0 0
        %993 = vmatpush1.bf16.msra.mxu0 %v853
        %994 = vmatprep.subr.bf16.mxu0 0
        %995 = vmatpush1.bf16.msra.mxu0 %v854
        %996 = vmatprep.subr.bf16.mxu0 0
        %997 = vmatpush1.bf16.msra.mxu0 %v855
        %998 = vmatprep.subr.bf16.mxu0 0
        %999 = vmatpush1.bf16.msra.mxu0 %v856
        %1000 = vmatprep.subr.bf16.mxu0 0
        %1001 = vmatpush1.bf16.msra.mxu0 %v857
        %1002 = vmatprep.mubr.bf16.mxu0 %v451
        %1003 = vmatmul.mubr.bf16.gmra.mrb[0].mxu0 %v450
        %v1004 = vpop.f32.mrb[0].mxu0
        %v1005 = vadd.f32 0.0, %v1004
        %v1006 = vpop.f32.mrb[0].mxu0
        %v1007 = vpop.f32.mrb[0].mxu0
        %v1008 = vadd.f32 0.0, %v1007
        %v1009 = vpop.f32.mrb[0].mxu0
        %1010 = vdwg.mxu0
        %1011 = vmatprep.subr.bf16.mxu0 0
        %1012 = vmatpush1.bf16.msra.mxu0 %v858
        %1013 = vmatprep.subr.bf16.mxu0 0
        %1014 = vmatpush1.bf16.msra.mxu0 %v859
        %1015 = vmatprep.subr.bf16.mxu0 0
        %1016 = vmatpush1.bf16.msra.mxu0 %v860
        %1017 = vmatprep.subr.bf16.mxu0 0
        %1018 = vmatpush1.bf16.msra.mxu0 %v861
        %1019 = vmatprep.subr.bf16.mxu0 0
        %1020 = vmatpush1.bf16.msra.mxu0 %v862
        %1021 = vmatprep.subr.bf16.mxu0 0
        %1022 = vmatpush1.bf16.msra.mxu0 %v863
        %1023 = vmatprep.subr.bf16.mxu0 0
        %1024 = vmatpush1.bf16.msra.mxu0 %v864
        %1025 = vmatprep.subr.bf16.mxu0 0
        %1026 = vmatpush1.bf16.msra.mxu0 %v865
        %1027 = vmatprep.subr.bf16.mxu0 0
        %1028 = vmatpush1.bf16.msra.mxu0 %v866
        %1029 = vmatprep.subr.bf16.mxu0 0
        %1030 = vmatpush1.bf16.msra.mxu0 %v867
        %1031 = vmatprep.subr.bf16.mxu0 0
        %1032 = vmatpush1.bf16.msra.mxu0 %v868
        %1033 = vmatprep.subr.bf16.mxu0 0
        %1034 = vmatpush1.bf16.msra.mxu0 %v869
        %1035 = vmatprep.subr.bf16.mxu0 0
        %1036 = vmatpush1.bf16.msra.mxu0 %v870
        %1037 = vmatprep.subr.bf16.mxu0 0
        %1038 = vmatpush1.bf16.msra.mxu0 %v871
        %1039 = vmatprep.subr.bf16.mxu0 0
        %1040 = vmatpush1.bf16.msra.mxu0 %v872
        %1041 = vmatprep.subr.bf16.mxu0 0
        %1042 = vmatpush1.bf16.msra.mxu0 %v873
        %1043 = vmatprep.mubr.bf16.mxu0 %v453
        %1044 = vmatmul.mubr.bf16.gmra.mrb[0].mxu0 %v452
        %v1045 = vpop.f32.mrb[0].mxu0
        %v1046 = vadd.f32 %v1005, %v1045
        %v1047 = vpop.f32.mrb[0].mxu0
        %v1048 = vpop.f32.mrb[0].mxu0
        %v1049 = vadd.f32 %v1008, %v1048
        %v1050 = vpop.f32.mrb[0].mxu0
        %1051 = vdwg.mxu0
        %1052 = vmatprep.subr.bf16.mxu0 0
        %1053 = vmatpush1.bf16.msra.mxu0 %v874
        %1054 = vmatprep.subr.bf16.mxu0 0
        %1055 = vmatpush1.bf16.msra.mxu0 %v875
        %1056 = vmatprep.subr.bf16.mxu0 0
        %1057 = vmatpush1.bf16.msra.mxu0 %v876
        %1058 = vmatprep.subr.bf16.mxu0 0
        %1059 = vmatpush1.bf16.msra.mxu0 %v877
        %1060 = vmatprep.subr.bf16.mxu0 0
        %1061 = vmatpush1.bf16.msra.mxu0 %v878
        %1062 = vmatprep.subr.bf16.mxu0 0
        %1063 = vmatpush1.bf16.msra.mxu0 %v879
        %1064 = vmatprep.subr.bf16.mxu0 0
        %1065 = vmatpush1.bf16.msra.mxu0 %v880
        %1066 = vmatprep.subr.bf16.mxu0 0
        %1067 = vmatpush1.bf16.msra.mxu0 %v881
        %1068 = vmatprep.subr.bf16.mxu0 0
        %1069 = vmatpush1.bf16.msra.mxu0 %v882
        %1070 = vmatprep.subr.bf16.mxu0 0
        %1071 = vmatpush1.bf16.msra.mxu0 %v883
        %1072 = vmatprep.subr.bf16.mxu0 0
        %1073 = vmatpush1.bf16.msra.mxu0 %v884
        %1074 = vmatprep.subr.bf16.mxu0 0
        %1075 = vmatpush1.bf16.msra.mxu0 %v885
        %1076 = vmatprep.subr.bf16.mxu0 0
        %1077 = vmatpush1.bf16.msra.mxu0 %v886
        %1078 = vmatprep.subr.bf16.mxu0 0
        %1079 = vmatpush1.bf16.msra.mxu0 %v887
        %1080 = vmatprep.subr.bf16.mxu0 0
        %1081 = vmatpush1.bf16.msra.mxu0 %v888
        %1082 = vmatprep.subr.bf16.mxu0 0
        %1083 = vmatpush1.bf16.msra.mxu0 %v889
        %1084 = vmatprep.mubr.bf16.mxu0 %v455
        %1085 = vmatmul.mubr.bf16.gmra.mrb[0].mxu0 %v454
        %v1086 = vpop.f32.mrb[0].mxu0
        %v1087 = vadd.f32 %v1046, %v1086
        %v1088 = vpop.f32.mrb[0].mxu0
        %v1089 = vpop.f32.mrb[0].mxu0
        %v1090 = vadd.f32 %v1049, %v1089
        %v1091 = vpop.f32.mrb[0].mxu0
        %1092 = vdwg.mxu0
        %1093 = vmatprep.subr.bf16.mxu0 0
        %1094 = vmatpush1.bf16.msra.mxu0 %v890
        %1095 = vmatprep.subr.bf16.mxu0 0
        %1096 = vmatpush1.bf16.msra.mxu0 %v891
        %1097 = vmatprep.subr.bf16.mxu0 0
        %1098 = vmatpush1.bf16.msra.mxu0 %v892
        %1099 = vmatprep.subr.bf16.mxu0 0
        %1100 = vmatpush1.bf16.msra.mxu0 %v893
        %1101 = vmatprep.subr.bf16.mxu0 0
        %1102 = vmatpush1.bf16.msra.mxu0 %v894
        %1103 = vmatprep.subr.bf16.mxu0 0
        %1104 = vmatpush1.bf16.msra.mxu0 %v895
        %1105 = vmatprep.subr.bf16.mxu0 0
        %1106 = vmatpush1.bf16.msra.mxu0 %v896
        %1107 = vmatprep.subr.bf16.mxu0 0
        %1108 = vmatpush1.bf16.msra.mxu0 %v897
        %1109 = vmatprep.subr.bf16.mxu0 0
        %1110 = vmatpush1.bf16.msra.mxu0 %v898
        %1111 = vmatprep.subr.bf16.mxu0 0
        %1112 = vmatpush1.bf16.msra.mxu0 %v899
        %1113 = vmatprep.subr.bf16.mxu0 0
        %1114 = vmatpush1.bf16.msra.mxu0 %v900
        %1115 = vmatprep.subr.bf16.mxu0 0
        %1116 = vmatpush1.bf16.msra.mxu0 %v901
        %1117 = vmatprep.subr.bf16.mxu0 0
        %1118 = vmatpush1.bf16.msra.mxu0 %v902
        %1119 = vmatprep.subr.bf16.mxu0 0
        %1120 = vmatpush1.bf16.msra.mxu0 %v903
        %1121 = vmatprep.subr.bf16.mxu0 0
        %1122 = vmatpush1.bf16.msra.mxu0 %v904
        %1123 = vmatprep.subr.bf16.mxu0 0
        %1124 = vmatpush1.bf16.msra.mxu0 %v905
        %1125 = vmatprep.mubr.bf16.mxu0 %v457
        %1126 = vmatmul.mubr.bf16.gmra.mrb[0].mxu0 %v456
        %v1127 = vpop.f32.mrb[0].mxu0
        %v1128 = vadd.f32 %v1087, %v1127
        %v1129 = vpop.f32.mrb[0].mxu0
        %v1130 = vpop.f32.mrb[0].mxu0
        %v1131 = vadd.f32 %v1090, %v1130
        %v1132 = vpop.f32.mrb[0].mxu0
        %1133 = vdwg.mxu0
        %v1134 = vadd.f32 %v448, %v1128
        %v1135 = vadd.f32 %v449, %v1131
        %1136 = vst [vmem:[#allocation2] sm:$0xff] %v1134
        %1137 = vst [vmem:[#allocation2 + $0x8] sm:$0xff] %v1135
        %p1138 = scmp.eq.s32.totalorder %s27, 1
        // Predicated region
        $region65: #{tpu_custom_call.1} parent=39 // pred_check
          %p1139 = pneg %p1138
        $region66: #{tpu_custom_call.1} parent=39 // pred_check_branch
          %1141 = sbr.rel (%p1139) target = $region68
        $region67: #{tpu_custom_call.1} parent=39 // pred_region
          %v1142 = vld [vmem:[#allocation2] sm:$0xff]
          %v1143 = vld [vmem:[#allocation2 + $0x8] sm:$0xff]
          %v1144 = vld [vmem:[#allocation11] sm:$0x1]
          %v1145 = vlaneseq
          %v1146 = vshrl.u32 %v1145, 7
          %v1147 = vsub.s32 0, %v1146
          %v1148 = vrot.slane %v1144, %v1147
          %v1149 = vmul.f32 %v1142, %v1148
          %v1150 = vmul.f32 %v1143, %v1148
          %v1151 = vld [vmem:[#allocation11 + $0x1] sm:$0x1]
          %v1152 = vlaneseq
          %v1153 = vshrl.u32 %v1152, 7
          %v1154 = vsub.s32 0, %v1153
          %v1155 = vrot.slane %v1151, %v1154
          %v1156 = vadd.f32 %v1149, %v1155
          %v1157 = vadd.f32 %v1150, %v1155
          %1158 = vst [vmem:[#allocation12] sm:$0xff] %v1156
          %1159 = vst [vmem:[#allocation12 + $0x8] sm:$0xff] %v1157
        $region68: #{tpu_custom_call.1} parent=39 // pred_fallthru
          _
        // Predicated region
        $region69: #{tpu_custom_call.1} parent=39 // pred_check
          %p1160 = pneg %p174
        $region70: #{tpu_custom_call.1} parent=39 // pred_check_branch
          %1162 = sbr.rel (%p1160) target = $region72
        $region71: #{tpu_custom_call.1} parent=39 // pred_region
          %s1163 = smul.u32 2, %s26
          %s1165 = ssub.s32 256, 256
          %1166 = vsyncadd [#allocation5], %s1165
          %s1167 = smul.addr %s1163, 128
          %s1168 = scalar_lea.hbm %s5, %s1167
          %s1169 = sshll.u32 [#allocation12], 4
          %s1170 = int_to_ptr.vmem [resolvable:$true] %s1169
          %1175 = dma.vmem_to_hbm [thread:$0]  %s1170, 256, %s1168, [#allocation5], 128, 128, 8
        $region72: #{tpu_custom_call.1} parent=39 // pred_fallthru
          _
        // Predicated region
        $region73: #{tpu_custom_call.1} parent=39 // pred_check
          %p1176 = pneg %p174
        $region74: #{tpu_custom_call.1} parent=39 // pred_check_branch
          %1178 = sbr.rel (%p1176) target = $region76
        $region75: #{tpu_custom_call.1} parent=39 // pred_region
          %1179 = dma.done [#allocation5], 256
        $region76: #{tpu_custom_call.1} parent=39 // pred_fallthru
          _
      $region40: #{tpu_custom_call.1} parent=5 // pred_fallthru
        _
      %p1180 = scmp.le.s32.totalorder 2, %s17
      // Predicated region
      $region77: #{tpu_custom_call.1} parent=5 // pred_check
        %p1181 = pneg %p1180
      $region78: #{tpu_custom_call.1} parent=5 // pred_check_branch
        %1183 = sbr.rel (%p1181) target = $region80
      $region79: #{tpu_custom_call.1} parent=5 // pred_region
        %s1184 = ssub.s32 %s17, 2
      $region80: #{tpu_custom_call.1} parent=5 // pred_fallthru
        _
    $region6: #{tpu_custom_call.1} parent=1 // loop_footer
      %s21 = sadd.s32 1, %s17
    $region7: #{tpu_custom_call.1} parent=1 // loop_footer_branch
      %16 = sbr.rel target = $region3
    $region8: #{tpu_custom_call.1} parent=1 // loop_exit
      _
    %1185 = vsyncpa [#allocation4], 1
    %s1186 = scalar_lea.sflag [#allocation4], 1
    %1187 = vsyncpa %s1186, 1
    %1188 = vsyncpa [#allocation7], 1
    %s1189 = scalar_lea.sflag [#allocation7], 1
    %1190 = vsyncpa %s1189, 1
    %1191 = vsyncpa [#allocation10], 1
    %1192 = vsyncpa [#allocation5], 1
    %s1193 = scalar_lea.sflag [#allocation5], 1
    %1194 = vsyncpa %s1193, 1

</llo_original>
